<compile_context>
chip_gen: v6e
topology: v6e:2x2x1
jax: 0.10.0
libtpu: 0.0.40
codegen_flags: <defaults>
</compile_context>

<pallas_src>
import jax
import jax.numpy as jnp
from jax import lax
from jax.experimental import pallas as pl
from jax.experimental.pallas import tpu as pltpu


# --------------------------------------------------------------------------
# Kernel 1: parameter-only work, w = q @ triu(r_full).  Run when params change.
# --------------------------------------------------------------------------
def _weight_kernel(q_ref, r_full_ref, w_ref):
    D = q_ref.shape[0]
    # Upper-triangular mask (col >= row); 2-D iota as required on TPU.
    row = lax.broadcasted_iota(jnp.int32, (D, D), 0)
    col = lax.broadcasted_iota(jnp.int32, (D, D), 1)
    r = jnp.where(col >= row, r_full_ref[...], jnp.zeros((), r_full_ref.dtype))
    w_ref[...] = jnp.dot(q_ref[...], r,
                         preferred_element_type=jnp.float32).astype(w_ref.dtype)


def precompute_weight(q, r_full):
    """w = q @ triu(r_full), computed once per parameter update."""
    D = q.shape[0]
    return pl.pallas_call(
        _weight_kernel,
        out_shape=jax.ShapeDtypeStruct((D, D), jnp.float32),
    )(q, r_full)


# --------------------------------------------------------------------------
# Kernel 2: hot-path GEMM, out = w @ x, tiled along the lane (N) axis.
# --------------------------------------------------------------------------
def _apply_weight_kernel(w_ref, x_ref, o_ref):
    o_ref[...] = jnp.dot(w_ref[...], x_ref[...],
                         preferred_element_type=jnp.float32).astype(o_ref.dtype)


def _pick_tn(N):
    """Largest lane-dense tile that evenly divides N."""
    for tn in (2048, 1024, 512, 256, 128):
        if N % tn == 0:
            return tn
    return N  # only reached if N < 128 and already lane-padded by caller


def _pad_lanes(x):
    """Pad the last (lane) axis up to a multiple of 128. Returns (x_pad, N)."""
    N = x.shape[-1]
    Np = ((N + 127) // 128) * 128
    if Np != N:
        x = jnp.pad(x, ((0, 0), (0, Np - N)))
    return x, N


def soft_qr_forward(w, x):
    """w: (D, D) precomputed weight, x: (D, N) -> (D, N)."""
    D = w.shape[0]
    x_pad, N = _pad_lanes(x)
    Np = x_pad.shape[1]
    tn = _pick_tn(Np)
    out = pl.pallas_call(
        _apply_weight_kernel,
        out_shape=jax.ShapeDtypeStruct((D, Np), x.dtype),
        grid_spec=pl.GridSpec(
            grid=(Np // tn,),
            in_specs=[
                pl.BlockSpec((D, D), lambda j: (0, 0)),   # weight, resident
                pl.BlockSpec((D, tn), lambda j: (0, j)),  # x column tile
            ],
            out_specs=pl.BlockSpec((D, tn), lambda j: (0, j)),
        ),
        compiler_params=pltpu.CompilerParams(
            # Independent column tiles -> split across both TCs on v7x.
            dimension_semantics=("parallel",)),
    )(w, x_pad)
    return out[:, :N] if Np != N else out


# --------------------------------------------------------------------------
# Kernel 3: fused one-shot path, out = (q @ triu(r_full)) @ x in one launch.
# Recomputes the tiny (D, D) weight per column tile, which keeps the parallel
# grid axis free of cross-tile scratch state (megacore-safe) and costs only
# D^3 = 32K FLOPs per tile.
# --------------------------------------------------------------------------
def _fused_kernel(q_ref, r_full_ref, x_ref, o_ref):
    D = q_ref.shape[0]
    row = lax.broadcasted_iota(jnp.int32, (D, D), 0)
    col = lax.broadcasted_iota(jnp.int32, (D, D), 1)
    r = jnp.where(col >= row, r_full_ref[...], jnp.zeros((), r_full_ref.dtype))
    w = jnp.dot(q_ref[...], r, preferred_element_type=jnp.float32)
    o_ref[...] = jnp.dot(w, x_ref[...],
                         preferred_element_type=jnp.float32).astype(o_ref.dtype)


def soft_qr_stimulus_combiner(q, r_full, sensory_input):
    """Exact module forward in a single pallas_call."""
    D = q.shape[0]
    x_pad, N = _pad_lanes(sensory_input)
    Np = x_pad.shape[1]
    tn = _pick_tn(Np)
    out = pl.pallas_call(
        _fused_kernel,
        out_shape=jax.ShapeDtypeStruct((D, Np), sensory_input.dtype),
        grid_spec=pl.GridSpec(
            grid=(Np // tn,),
            in_specs=[
                pl.BlockSpec((D, D), lambda j: (0, 0)),   # q, resident
                pl.BlockSpec((D, D), lambda j: (0, 0)),   # r_full, resident
                pl.BlockSpec((D, tn), lambda j: (0, j)),  # x column tile
            ],
            out_specs=pl.BlockSpec((D, tn), lambda j: (0, j)),
        ),
        compiler_params=pltpu.CompilerParams(
            dimension_semantics=("parallel",)),
    )(q, r_full, x_pad)
    return out[:, :N] if Np != N else out


# --------------------------------------------------------------------------
# Parameter init + pure-JAX reference.
# --------------------------------------------------------------------------
def init_params(key, sensory_pop_size, output_size):
    """Mirror the module's __init__: q orthogonal, r_full registered from q."""
    del sensory_pop_size  # unused: the module registers r_full := q
    k_q, _ = jax.random.split(key)
    a = jax.random.normal(k_q, (output_size, output_size), dtype=jnp.float32)
    q, _ = jnp.linalg.qr(a)
    r_full = q  # reproduces `register_parameter('r_full', Parameter(q))`
    return q.astype(jnp.float32), r_full.astype(jnp.float32)


def reference_forward(q, r_full, x):
    r = jnp.triu(r_full)
    return (q @ r) @ x


if __name__ == "__main__":
    key = jax.random.PRNGKey(0)
    sensory_pop_size = 48   # nominal; see note in init_params
    output_size = 32        # D
    batch = 8
    timesteps = 16          # stack timesteps along N -> lane-dense N = 128

    k_params, k_x = jax.random.split(key)
    q, r_full = init_params(k_params, sensory_pop_size, output_size)

    # sensory_input layout: (output_size D, N) where N = batch * timesteps,
    # i.e. many independent forward invocations packed into one pallas_call.
    N = batch * timesteps
    x = jax.random.normal(k_x, (output_size, N), dtype=jnp.float32)

    # Hot-path usage: weight precomputed once, reused across forward calls.
    w = jax.block_until_ready(precompute_weight(q, r_full))
    out = jax.block_until_ready(soft_qr_forward(w, x))

    # One-shot fused path (exact module semantics) also exercised.
    out2 = jax.block_until_ready(soft_qr_stimulus_combiner(q, r_full, x))

    ref = reference_forward(q, r_full, x)
    assert out.shape == ref.shape == (output_size, N)
    assert jnp.allclose(out, ref, atol=1e-4, rtol=1e-5), "mismatch vs reference"
    assert jnp.allclose(out2, ref, atol=1e-4, rtol=1e-5), "mismatch vs reference"

    print("KERNEL_OK")
</pallas_src>

<mosaic_0001>
module attributes {stable_mosaic.version = 11 : i64} {
  func.func @_weight_kernel(%arg0: memref<32x32xf32, #tpu.memory_space<vmem>>, %arg1: memref<32x32xf32, #tpu.memory_space<vmem>>, %arg2: memref<32x32xf32, #tpu.memory_space<vmem>>) attributes {dimension_semantics = [], scalar_prefetch = 0 : i64, scratch_operands = 0 : i64, tpu.core_type = #tpu.core_type<tc>} {
    %0 = tpu.iota {dimensions = array<i32: 0>} : vector<32x32xi32>
    %1 = tpu.iota {dimensions = array<i32: 1>} : vector<32x32xi32>
    %2 = arith.cmpi sge, %1, %0 : vector<32x32xi32>
    %c0 = arith.constant 0 : index
    %c0_0 = arith.constant 0 : index
    %3 = vector.load %arg1[%c0, %c0_0] : memref<32x32xf32, #tpu.memory_space<vmem>>, vector<32x32xf32>
    %cst = arith.constant 0.000000e+00 : f32
    %4 = vector.broadcast %cst : f32 to vector<32x32xf32>
    %5 = arith.select %2, %3, %4 : vector<32x32xi1>, vector<32x32xf32>
    %c0_1 = arith.constant 0 : index
    %c0_2 = arith.constant 0 : index
    %6 = vector.load %arg0[%c0_1, %c0_2] : memref<32x32xf32, #tpu.memory_space<vmem>>, vector<32x32xf32>
    %cst_3 = arith.constant dense<0.000000e+00> : vector<32x32xf32>
    %7 = tpu.matmul %6, %5, %cst_3 {dimension_numbers = #tpu.dot_dimension_numbers<[1], [0], [0], [1], [0, 0, 1, 1], [], []>} : vector<32x32xf32>, vector<32x32xf32>, vector<32x32xf32> -> vector<32x32xf32>
    %c0_4 = arith.constant 0 : index
    %c0_5 = arith.constant 0 : index
    %8 = vector.load %arg2[%c0_4, %c0_5] : memref<32x32xf32, #tpu.memory_space<vmem>>, vector<32x32xf32>
    tpu.vector_store %arg2[%c0_4, %c0_5], %7 {strides = array<i32>} : memref<32x32xf32, #tpu.memory_space<vmem>>, vector<32x32xf32>,
    return
  }
}

</mosaic_0001>

<llo_original>
// kernel: tpu_custom_call.1
$region0: #{tpu_custom_call.1}
  #allocation0 [shape = 'u32[]', space=smem, size = 0x4, offset = 0x4, fixed_abs, tag = 'smem constant byte address 0x4 - core index']
  #allocation1 [shape = 'u32[144,128]{1,0:T(1,128)}', space=vmem, size = 0x12000, scoped, tag = 'internal scratch']
  %s0 = inlined_call_operand.hbm [shape: f32[32,32], index: 0, kind: input, shape index: {}]
  %s1 = inlined_call_operand.hbm [shape: f32[32,32], index: 1, kind: input, shape index: {}]
  %s2 = inlined_call_operand.hbm [shape: f32[32,32], index: 2, kind: output, shape index: {}]
  %s3 = sld [smem:[#allocation0]]
  $region26: #{tpu_custom_call.1} parent=0
    _
  %s5 = ssub.s32 1, %s3
  %s6 = scalar_select 0, %s5, %s3
  $region1: #{tpu_custom_call.1} parent=0
    #allocation2 [shape = 'u8[16384]{0}', space=vmem, size = 0x4000, scoped, tag = 'input window, operand 0, single buffered']
    #allocation3 [shape = 's32[1]{0}', space=sflag, size = 0x4, scoped, tag = 'scoped memory for tpu_custom_call.1']
    #allocation4 [shape = 's32[1]{0}', space=sflag, size = 0x4, scoped, tag = 'scoped memory for tpu_custom_call.1']
    #allocation5 [shape = 'u8[16384]{0}', space=vmem, size = 0x4000, scoped, tag = 'input window, operand 1, single buffered']
    #allocation6 [shape = 's32[1]{0}', space=sflag, size = 0x4, scoped, tag = 'scoped memory for tpu_custom_call.1']
    #allocation7 [shape = 'u8[16384]{0}', space=vmem, size = 0x4000, scoped, tag = 'output window, operand 0, single buffered']
    %7 = vsyncpa [#allocation3], 0
    %8 = vsyncpa [#allocation6], 0
    %9 = vsyncpa [#allocation4], 0
    // Predicated region
    $region2: #{tpu_custom_call.1} parent=1 // pred_check
      _
    $region3: #{tpu_custom_call.1} parent=1 // pred_check_branch
      %11 = sbr.rel (0) target = $region5
    $region4: #{tpu_custom_call.1} parent=1 // pred_region
      %s13 = ssub.s32 512, 512
      %14 = vsyncadd [#allocation3], %s13
      %s15 = sshll.u32 [#allocation2], 4
      %s16 = int_to_ptr.vmem [resolvable:$true] %s15
      %21 = dma.hbm_to_vmem [thread:$0]  %s0, 512, %s16, [#allocation3], 128, 128, 8
    $region5: #{tpu_custom_call.1} parent=1 // pred_fallthru
      _
    // Predicated region
    $region6: #{tpu_custom_call.1} parent=1 // pred_check
      _
    $region7: #{tpu_custom_call.1} parent=1 // pred_check_branch
      %23 = sbr.rel (0) target = $region9
    $region8: #{tpu_custom_call.1} parent=1 // pred_region
      %s25 = ssub.s32 512, 512
      %26 = vsyncadd [#allocation6], %s25
      %s27 = sshll.u32 [#allocation5], 4
      %s28 = int_to_ptr.vmem [resolvable:$true] %s27
      %33 = dma.hbm_to_vmem [thread:$0]  %s1, 512, %s28, [#allocation6], 128, 128, 8
    $region9: #{tpu_custom_call.1} parent=1 // pred_fallthru
      _
    // Predicated region
    $region10: #{tpu_custom_call.1} parent=1 // pred_check
      _
    $region11: #{tpu_custom_call.1} parent=1 // pred_check_branch
      %35 = sbr.rel (0) target = $region13
    $region12: #{tpu_custom_call.1} parent=1 // pred_region
      %36 = dma.done [#allocation3], 512
    $region13: #{tpu_custom_call.1} parent=1 // pred_fallthru
      _
    // Predicated region
    $region14: #{tpu_custom_call.1} parent=1 // pred_check
      _
    $region15: #{tpu_custom_call.1} parent=1 // pred_check_branch
      %38 = sbr.rel (0) target = $region17
    $region16: #{tpu_custom_call.1} parent=1 // pred_region
      %39 = dma.done [#allocation6], 512
    $region17: #{tpu_custom_call.1} parent=1 // pred_fallthru
      _
    %v40 = vlaneseq
    %v41 = vshrl.u32 %v40, 7
    %v42 = vadd.s32 %v41, 8
    %v43 = vadd.s32 %v41, 16
    %v44 = vadd.s32 %v41, 24
    %v45 = vlaneseq
    %v46 = vand.u32 %v45, 127
    %vm47 = vcmp.ge.s32.totalorder %v46, %v41
    %vm48 = vcmp.ge.s32.totalorder %v46, %v42
    %vm49 = vcmp.ge.s32.totalorder %v46, %v43
    %vm50 = vcmp.ge.s32.totalorder %v46, %v44
    %v51 = vld [vmem:[#allocation5] sm:$0xff]
    %v52 = vld [vmem:[#allocation5 + $0x8] sm:$0xff]
    %v53 = vld [vmem:[#allocation5 + $0x10] sm:$0xff]
    %v54 = vld [vmem:[#allocation5 + $0x18] sm:$0xff]
    %v55 = vsel %vm47, %v51, 0.0
    %v56 = vsel %vm48, %v52, 0.0
    %v57 = vsel %vm49, %v53, 0.0
    %v58 = vsel %vm50, %v54, 0.0
    %v59 = vld [vmem:[#allocation2] sm:$0xff]
    %v60 = vld [vmem:[#allocation2 + $0x8] sm:$0xff]
    %v61 = vld [vmem:[#allocation2 + $0x10] sm:$0xff]
    %v62 = vld [vmem:[#allocation2 + $0x18] sm:$0xff]
    %vm63 = vcmask 261120
    %v65 = vsel %vm63, %v59, 0
    %v68 = vsel %vm63, %v60, 0
    %v71 = vsel %vm63, %v61, 0
    %v74 = vsel %vm63, %v62, 0
    %76 = vmatprep.subr.mxu0 0.0
    %77 = vmatpush1.msra.mxu0 0.0
    %78 = vmatprep.subr.mxu0 0.0
    %79 = vmatpush1.msra.mxu0 0.0
    %80 = vmatprep.subr.mxu0 0.0
    %81 = vmatpush1.msra.mxu0 0.0
    %82 = vmatprep.subr.mxu0 0.0
    %83 = vmatpush1.msra.mxu0 0.0
    %84 = vmatprep.subr.mxu0 0.0
    %85 = vmatpush1.msra.mxu0 0.0
    %86 = vmatprep.subr.mxu0 0.0
    %87 = vmatpush1.msra.mxu0 0.0
    %88 = vmatprep.subr.mxu0 0.0
    %89 = vmatpush1.msra.mxu0 0.0
    %90 = vmatprep.subr.mxu0 0.0
    %91 = vmatpush1.msra.mxu0 0.0
    %92 = vmatprep.subr.mxu0 0.0
    %93 = vmatpush1.msra.mxu0 0.0
    %94 = vmatprep.subr.mxu0 0.0
    %95 = vmatpush1.msra.mxu0 0.0
    %96 = vmatprep.subr.mxu0 0.0
    %97 = vmatpush1.msra.mxu0 0.0
    %98 = vmatprep.subr.mxu0 0.0
    %99 = vmatpush1.msra.mxu0 0.0
    %100 = vmatprep.subr.mxu0 0.0
    %101 = vmatpush1.msra.mxu0 %v58
    %102 = vmatprep.subr.mxu0 0.0
    %103 = vmatpush1.msra.mxu0 %v57
    %104 = vmatprep.subr.mxu0 0.0
    %105 = vmatpush1.msra.mxu0 %v56
    %106 = vmatprep.subr.mxu0 0.0
    %107 = vmatpush1.msra.mxu0 %v55
    %108 = vmatprep.subr.mxu0 0.0
    %109 = vmatpush2.msra.mxu0 0.0
    %110 = vmatprep.subr.mxu0 0.0
    %111 = vmatpush2.msra.mxu0 0.0
    %112 = vmatprep.subr.mxu0 0.0
    %113 = vmatpush2.msra.mxu0 0.0
    %114 = vmatprep.subr.mxu0 0.0
    %115 = vmatpush2.msra.mxu0 0.0
    %116 = vmatprep.subr.mxu0 0.0
    %117 = vmatpush2.msra.mxu0 0.0
    %118 = vmatprep.subr.mxu0 0.0
    %119 = vmatpush2.msra.mxu0 0.0
    %120 = vmatprep.subr.mxu0 0.0
    %121 = vmatpush2.msra.mxu0 0.0
    %122 = vmatprep.subr.mxu0 0.0
    %123 = vmatpush2.msra.mxu0 0.0
    %124 = vmatprep.subr.mxu0 0.0
    %125 = vmatpush2.msra.mxu0 0.0
    %126 = vmatprep.subr.mxu0 0.0
    %127 = vmatpush2.msra.mxu0 0.0
    %128 = vmatprep.subr.mxu0 0.0
    %129 = vmatpush2.msra.mxu0 0.0
    %130 = vmatprep.subr.mxu0 0.0
    %131 = vmatpush2.msra.mxu0 0.0
    %132 = vmatprep.subr.mxu0 0.0
    %133 = vmatpush2.msra.mxu0 0.0
    %134 = vmatprep.subr.mxu0 0.0
    %135 = vmatpush2.msra.mxu0 0.0
    %136 = vmatprep.subr.mxu0 0.0
    %137 = vmatpush2.msra.mxu0 0.0
    %138 = vmatprep.subr.mxu0 0.0
    %139 = vmatpush2.msra.mxu0 0.0
    %140 = vmatprep.mubr.f32.mxu0 0.0
    %141 = vmatmul.mubr.f32.gmra.mxu0 %v65
    %v142 = vpop.f32.mrf.mxu0
    %v143 = vadd.f32 0.0, %v142
    %v144 = vpop.f32.mrf.mxu0
    %145 = vmatprep.mubr.f32.mxu0 0.0
    %146 = vmatmul.mubr.f32.gmra.mxu0 %v68
    %v147 = vpop.f32.mrf.mxu0
    %v148 = vadd.f32 0.0, %v147
    %v149 = vpop.f32.mrf.mxu0
    %150 = vmatprep.mubr.f32.mxu0 0.0
    %151 = vmatmul.mubr.f32.gmra.mxu0 %v71
    %v152 = vpop.f32.mrf.mxu0
    %v153 = vadd.f32 0.0, %v152
    %v154 = vpop.f32.mrf.mxu0
    %155 = vmatprep.mubr.f32.mxu0 0.0
    %156 = vmatmul.mubr.f32.gmra.mxu0 %v74
    %v157 = vpop.f32.mrf.mxu0
    %v158 = vadd.f32 0.0, %v157
    %v159 = vpop.f32.mrf.mxu0
    %160 = vdwg.mxu0
    %161 = vst.msk [vmem:[#allocation7] sm:$0xff] %vm63, %v143
    %162 = vst.msk [vmem:[#allocation7 + $0x8] sm:$0xff] %vm63, %v148
    %163 = vst.msk [vmem:[#allocation7 + $0x10] sm:$0xff] %vm63, %v153
    %164 = vst.msk [vmem:[#allocation7 + $0x18] sm:$0xff] %vm63, %v158
    // Predicated region
    $region18: #{tpu_custom_call.1} parent=1 // pred_check
      _
    $region19: #{tpu_custom_call.1} parent=1 // pred_check_branch
      %166 = sbr.rel (0) target = $region21
    $region20: #{tpu_custom_call.1} parent=1 // pred_region
      %s168 = ssub.s32 512, 512
      %169 = vsyncadd [#allocation4], %s168
      %s170 = sshll.u32 [#allocation7], 4
      %s171 = int_to_ptr.vmem [resolvable:$true] %s170
      %176 = dma.vmem_to_hbm [thread:$0]  %s171, 512, %s2, [#allocation4], 128, 128, 8
    $region21: #{tpu_custom_call.1} parent=1 // pred_fallthru
      _
    // Predicated region
    $region22: #{tpu_custom_call.1} parent=1 // pred_check
      _
    $region23: #{tpu_custom_call.1} parent=1 // pred_check_branch
      %178 = sbr.rel (0) target = $region25
    $region24: #{tpu_custom_call.1} parent=1 // pred_region
      %179 = dma.done [#allocation4], 512
    $region25: #{tpu_custom_call.1} parent=1 // pred_fallthru
      _
    %180 = vsyncpa [#allocation3], 1
    %181 = vsyncpa [#allocation6], 1
    %182 = vsyncpa [#allocation4], 1

</llo_original>
